<compile_context>
chip_gen: v6e
topology: v6e:2x2x1
jax: 0.10.0
libtpu: 0.0.40
codegen_flags: <defaults>
</compile_context>

<pallas_src>
import math
import jax
import jax.numpy as jnp
from jax import lax
from jax.experimental import pallas as pl
from jax.experimental.pallas import tpu as pltpu

# Module hyper-parameters (defaults of SAM.__init__)
NUM_IN = 32            # num_in
PLANE_MID = 16         # plane_mid
MIDS = 4               # mids
NUM_S = PLANE_MID      # self.num_s
NUM_N = MIDS * MIDS    # self.num_n = 16

# contract last dim of both operands (a @ b.T) without materializing b.T
_TRANS_B = (((1,), (1,)), ((), ()))


# ----------------------------------------------------------------------------
# Pallas kernel factory (closes over static batch tile and the exp dtype)
# ----------------------------------------------------------------------------
def _make_sam_kernel(b_tile, exp_dtype):
    def sam_kernel(x_ref, gate_ref, mask_ref, wsp_ref, bsp_ref, pool_ref,
                   w1t_ref, b1_ref, w2_ref, wext_ref, out_ref):
        wsp = wsp_ref[...]        # (2S, C)   bf16  fused conv_state|conv_proj weight
        bsp = bsp_ref[...]        # (2S, 1)   f32   fused bias
        pool = pool_ref[...]      # (Nn, Lp)  bf16  inner-4x4 adaptive-pool matrix
        mask = mask_ref[...]      # (1, Lp)   f32   1 = valid lane, 0 = L padding
        w1t = w1t_ref[...]        # (Nn, Nn)  f32   gcn.conv1 weight, pre-transposed
        b1 = b1_ref[...]          # (1, Nn)   f32
        w2 = w2_ref[...]          # (S, S)    f32
        wext = wext_ref[...]      # (C, S)    f32

        def body(b, carry):
            # x is streamed in its incoming dtype; the bf16 cast for the MXU is
            # a free VPU op and keeps only one (C, Lp) temporary live.
            x_bf = x_ref[b].astype(jnp.bfloat16)        # (C, Lp)
            edge_p = gate_ref[b].astype(jnp.float32)    # (1, Lp)  softmax(edge)[:,1]

            # fused conv_state / conv_proj: one pass of x through the MXU
            xsp = jnp.dot(wsp, x_bf, preferred_element_type=jnp.float32) + bsp  # (2S, Lp)
            x_state = xsp[:NUM_S] * mask   # mask kills bias leak on padded lanes
            x_proj = xsp[NUM_S:]

            # anchors: priors(x_mask)[:, :, 1:-1, 1:-1]  ==  pool @ x_mask^T
            x_mask_bf = (x_proj * edge_p).astype(jnp.bfloat16)
            anchor_t = lax.dot_general(pool, x_mask_bf, _TRANS_B,
                                       preferred_element_type=jnp.float32)      # (Nn, S)

            # p = softmax_over_Nn(anchor^T @ x_proj); exp in bf16 on v6e/v7x EUP
            x_proj_bf = x_proj.astype(jnp.bfloat16)
            z = jnp.dot(anchor_t.astype(jnp.bfloat16), x_proj_bf,
                        preferred_element_type=jnp.float32)                     # (Nn, Lp)
            z = z - jnp.max(z, axis=0, keepdims=True)
            ez = jnp.exp(z.astype(exp_dtype)).astype(jnp.float32)
            p = ez * pl.reciprocal(jnp.sum(ez, axis=0, keepdims=True), approx=True)
            p_bf = p.astype(jnp.bfloat16)

            # x_n_state = x_state @ p^T  (contract over L, no transpose)
            x_n_state = lax.dot_general(x_state.astype(jnp.bfloat16), p_bf, _TRANS_B,
                                        preferred_element_type=jnp.float32)     # (S, Nn)

            # GCN (tiny, f32): h2 = relu(w2 @ (x_n_state @ w1^T + b1 - x_n_state))
            h1 = jnp.dot(x_n_state, w1t, preferred_element_type=jnp.float32) + b1
            h2 = jnp.maximum(
                jnp.dot(w2, h1 - x_n_state, preferred_element_type=jnp.float32), 0.0)

            # reassociated tail: out = x + (wext @ h2) @ p; residual in f32
            # registers, cast only at the store (output dtype == input dtype).
            t = jnp.dot(wext, h2, preferred_element_type=jnp.float32)           # (C, Nn)
            res = jnp.dot(t.astype(jnp.bfloat16), p_bf,
                          preferred_element_type=jnp.float32)                   # (C, Lp)
            out_ref[b] = (res + x_ref[b].astype(jnp.float32)).astype(out_ref.dtype)
            return carry

        # fori_loop bounds live ranges to one batch element; unroll small tiles
        # so the LLO scheduler can still interleave across iterations.
        lax.fori_loop(0, b_tile, body, 0, unroll=bool(b_tile <= 4))

    return sam_kernel


# ----------------------------------------------------------------------------
# Glue helpers (plain JAX)
# ----------------------------------------------------------------------------
def adaptive_pool_matrix(in_size, out_size):
    """(out, in) averaging matrix replicating nn.AdaptiveAvgPool2d per axis."""
    rows = []
    for i in range(out_size):
        start = (i * in_size) // out_size
        end = -(-((i + 1) * in_size) // out_size)  # ceil
        row = jnp.zeros((in_size,), jnp.float32)
        row = row.at[start:end].set(1.0 / (end - start))
        rows.append(row)
    return jnp.stack(rows)


def upsample_nearest(x4, h, w):
    """F.upsample(x4, (h, w)) with default mode='nearest'."""
    _, _, hi, wi = x4.shape
    hidx = jnp.floor(jnp.arange(h) * (hi / h)).astype(jnp.int32)
    widx = jnp.floor(jnp.arange(w) * (wi / w)).astype(jnp.int32)
    hidx = jnp.clip(hidx, 0, hi - 1)
    widx = jnp.clip(widx, 0, wi - 1)
    return x4[:, :, hidx, :][:, :, :, widx]


def init_params(key):
    """Deterministic synthetic parameters (PyTorch conv-like uniform init)."""
    ks = jax.random.split(key, 8)

    def u(k, shape, fan_in):
        b = 1.0 / math.sqrt(fan_in)
        return jax.random.uniform(k, shape, jnp.float32, -b, b)

    return dict(
        w_state=u(ks[0], (NUM_S, NUM_IN), NUM_IN),   # conv_state weight
        b_state=u(ks[1], (NUM_S, 1), NUM_IN),        # conv_state bias
        w_proj=u(ks[2], (NUM_S, NUM_IN), NUM_IN),    # conv_proj weight
        b_proj=u(ks[3], (NUM_S, 1), NUM_IN),         # conv_proj bias
        w1=u(ks[4], (NUM_N, NUM_N), NUM_N),          # gcn.conv1 weight
        b1=u(ks[5], (1, NUM_N), NUM_N),              # gcn.conv1 bias
        w2=u(ks[6], (NUM_S, NUM_S), NUM_S),          # gcn.conv2 weight (no bias)
        w_ext=u(ks[7], (NUM_IN, NUM_S), NUM_S),      # conv_extend weight (no bias)
    )


# ----------------------------------------------------------------------------
# Wrapper around pallas_call
# ----------------------------------------------------------------------------
def sam_forward(x, edge, params, out_dtype=None):
    n, c, h, w = x.shape
    out_dtype = x.dtype if out_dtype is None else jnp.dtype(out_dtype)
    L = h * w
    Lp = -(-L // 128) * 128                     # lane-dense spatial length

    # hardware query: physical VMEM (cap at 0.75x) and EUP exp dtype
    try:
        vmem_cap = int(pltpu.get_tpu_info().vmem_capacity_bytes)
    except Exception:
        vmem_cap = 64 << 20                     # conservative (v7x-sized) fallback
    vmem_budget = (vmem_cap * 3) // 4
    block_budget = (6 << 20) if vmem_cap >= (96 << 20) else (5 << 19)  # v5e/v6e vs v7x
    kind = ""
    try:
        kind = jax.devices()[0].device_kind.lower()
    except Exception:
        pass
    exp_dtype = jnp.float32 if any(g in kind for g in ("v2", "v3", "v4", "v5")) \
        else jnp.bfloat16

    # edge gate at the ORIGINAL low resolution (softmax commutes with nearest
    # upsample), then upsample the single channel and stream it as bf16.
    gate = jax.nn.softmax(edge.astype(jnp.float32), axis=1)[:, 1:2]   # (n,1,hi,wi)
    gate = upsample_nearest(gate, h, w).reshape(n, 1, L).astype(jnp.bfloat16)

    # x in its incoming dtype: reshape is a free view; pad only when needed.
    x_flat = x.reshape(n, c, L)

    # inner 4x4 of the 6x6 adaptive pool as a single (NUM_N, Lp) pooling matrix
    ph = adaptive_pool_matrix(h, MIDS + 2)[1:-1]   # (4, H)
    pw = adaptive_pool_matrix(w, MIDS + 2)[1:-1]   # (4, W)
    pool = jnp.einsum('ph,qw->pqhw', ph, pw).reshape(NUM_N, L)

    if Lp != L:
        padL = [(0, 0), (0, 0), (0, Lp - L)]
        x_flat = jnp.pad(x_flat, padL)
        gate = jnp.pad(gate, padL)
        pool = jnp.pad(pool, [(0, 0), (0, Lp - L)])
    lane_mask = (jnp.arange(Lp) < L).astype(jnp.float32).reshape(1, Lp)

    # batch tile: amortize the ~0.35us/grid-step overhead, but keep >=4 grid
    # steps (2 per TensorCore on v7x megacore) and stay inside the VMEM budget.
    x_bytes = jnp.dtype(x.dtype).itemsize
    o_bytes = jnp.dtype(out_dtype).itemsize
    bytes_per_b = c * Lp * x_bytes + Lp * 2 + c * Lp * o_bytes   # x + gate(bf16) + out
    b_tile = int(max(1, min(n, 32, block_budget // max(bytes_per_b, 1))))
    b_tile = int(min(b_tile, max(1, n // 4)))

    const_bytes = NUM_N * Lp * 2 + Lp * 4 + (64 << 10)           # pool + mask + weights
    tmp_bytes = 1024 * Lp + (64 << 10)                           # per-iter temporaries
    while b_tile > 1 and 2 * b_tile * bytes_per_b + const_bytes + tmp_bytes > vmem_budget:
        b_tile -= 1
    est = 2 * b_tile * bytes_per_b + const_bytes + tmp_bytes
    vmem_limit = int(min(vmem_budget, max(16 << 20, 2 * est)))
    # TODO(synk): if est at b_tile=1 still exceeds the budget (L >~ 32-64K,
    # esp. v7x's 64 MiB VMEM), add an L-tiled multi-pass schedule (accumulate
    # anchor, then x_n_state, then emit output tiles) instead of one Lp block.

    n_pad = -(-n // b_tile) * b_tile
    if n_pad != n:
        padB = [(0, n_pad - n), (0, 0), (0, 0)]
        x_flat = jnp.pad(x_flat, padB)
        gate = jnp.pad(gate, padB)

    # bf16 for the MXU-streamed operands; biases & small weights stay f32
    pool_bf = pool.astype(jnp.bfloat16)
    wsp = jnp.concatenate([params['w_state'], params['w_proj']], axis=0).astype(jnp.bfloat16)
    bsp = jnp.concatenate([params['b_state'], params['b_proj']], axis=0).astype(jnp.float32)
    w1t = params['w1'].T.astype(jnp.float32)       # pre-transposed in the wrapper
    b1 = params['b1'].astype(jnp.float32)
    w2 = params['w2'].astype(jnp.float32)
    wext = params['w_ext'].astype(jnp.float32)

    kernel = _make_sam_kernel(b_tile, exp_dtype)

    grid_spec = pltpu.PrefetchScalarGridSpec(
        num_scalar_prefetch=0,
        grid=(n_pad // b_tile,),
        in_specs=[
            pl.BlockSpec((b_tile, c, Lp), lambda b: (b, 0, 0)),    # x (incoming dtype)
            pl.BlockSpec((b_tile, 1, Lp), lambda b: (b, 0, 0)),    # edge gate (bf16)
            pl.BlockSpec(lane_mask.shape, lambda b: (0, 0)),       # lane mask
            pl.BlockSpec(wsp.shape, lambda b: (0, 0)),             # fused conv weight
            pl.BlockSpec(bsp.shape, lambda b: (0, 0)),             # fused conv bias
            pl.BlockSpec(pool_bf.shape, lambda b: (0, 0)),         # pool matrix
            pl.BlockSpec(w1t.shape, lambda b: (0, 0)),             # gcn.conv1 weight^T
            pl.BlockSpec(b1.shape, lambda b: (0, 0)),              # gcn.conv1 bias
            pl.BlockSpec(w2.shape, lambda b: (0, 0)),              # gcn.conv2 weight
            pl.BlockSpec(wext.shape, lambda b: (0, 0)),            # conv_extend weight
        ],
        out_specs=pl.BlockSpec((b_tile, c, Lp), lambda b: (b, 0, 0)),
        # NOTE(v5e): if profiling shows exposed input DMA, add
        # pipeline_mode=pl.Buffered(3) on the x / out BlockSpecs (skip on v7x).
    )

    out = pl.pallas_call(
        kernel,
        out_shape=jax.ShapeDtypeStruct((n_pad, c, Lp), out_dtype),
        grid_spec=grid_spec,
        compiler_params=pltpu.CompilerParams(
            dimension_semantics=("parallel",),
            vmem_limit_bytes=vmem_limit),
    )(x_flat, gate, lane_mask, wsp, bsp, pool_bf, w1t, b1, w2, wext)

    if n_pad != n or Lp != L:
        out = out[:n, :, :L]
    return out.reshape(n, c, h, w)


# ----------------------------------------------------------------------------
# Pure-JAX f32 reference (module semantics) for sanity checking the kernel.
# ----------------------------------------------------------------------------
def sam_reference(x, edge, params):
    n, c, h, w = x.shape
    L = h * w
    edge_up = upsample_nearest(edge, h, w)
    ep = jax.nn.softmax(edge_up, axis=1)[:, 1:2].reshape(n, 1, L)
    xf = x.reshape(n, c, L)
    xs = jnp.einsum('sc,ncl->nsl', params['w_state'], xf) + params['b_state'][None]
    xp = jnp.einsum('sc,ncl->nsl', params['w_proj'], xf) + params['b_proj'][None]
    xm = xp * ep
    ph = adaptive_pool_matrix(h, MIDS + 2)[1:-1]
    pw = adaptive_pool_matrix(w, MIDS + 2)[1:-1]
    pool = jnp.einsum('ph,qw->pqhw', ph, pw).reshape(NUM_N, L)
    anchor = jnp.einsum('nsl,kl->nsk', xm, pool)
    z = jnp.einsum('nsk,nsl->nkl', anchor, xp)
    p = jax.nn.softmax(z, axis=1)
    xns = jnp.einsum('nsl,nkl->nsk', xs, p)
    h1 = jnp.einsum('nsk,jk->nsj', xns, params['w1']) + params['b1'][None]
    hh = h1 - xns
    h2 = jnp.maximum(jnp.einsum('ts,nsk->ntk', params['w2'], hh), 0.0)
    xsr = jnp.einsum('nsk,nkl->nsl', h2, p)
    out = xf + jnp.einsum('cs,nsl->ncl', params['w_ext'], xsr)
    return out.reshape(n, c, h, w)


if __name__ == "__main__":
    key = jax.random.PRNGKey(0)
    kx, ke, kp = jax.random.split(key, 3)

    N, H, W = 2, 16, 16
    x = jax.random.normal(kx, (N, NUM_IN, H, W), jnp.float32)
    edge = jax.random.normal(ke, (N, 2, 8, 8), jnp.float32)  # channel 1 of softmax is used
    params = init_params(kp)

    out = jax.block_until_ready(sam_forward(x, edge, params))
    ref = sam_reference(x, edge, params)

    assert out.shape == (N, NUM_IN, H, W)
    assert out.dtype == x.dtype
    max_err = float(jnp.max(jnp.abs(out.astype(jnp.float32) - ref)))
    # bf16-quantized streamed operands + approx EUP reciprocal vs. pure f32 reference
    assert jnp.allclose(out.astype(jnp.float32), ref, atol=5e-2, rtol=5e-2), max_err
    print("KERNEL_OK")
</pallas_src>

<mosaic_0001>
module attributes {stable_mosaic.version = 11 : i64} {
  func.func @sam_kernel(%arg0: i32, %arg1: memref<1x32x256xf32, #tpu.memory_space<vmem>>, %arg2: memref<1x1x256xbf16, #tpu.memory_space<vmem>>, %arg3: memref<1x256xf32, #tpu.memory_space<vmem>>, %arg4: memref<32x32xbf16, #tpu.memory_space<vmem>>, %arg5: memref<32x1xf32, #tpu.memory_space<vmem>>, %arg6: memref<16x256xbf16, #tpu.memory_space<vmem>>, %arg7: memref<16x16xf32, #tpu.memory_space<vmem>>, %arg8: memref<1x16xf32, #tpu.memory_space<vmem>>, %arg9: memref<16x16xf32, #tpu.memory_space<vmem>>, %arg10: memref<32x16xf32, #tpu.memory_space<vmem>>, %arg11: memref<1x32x256xf32, #tpu.memory_space<vmem>>) attributes {dimension_semantics = [#tpu.dimension_semantics<parallel>], iteration_bounds = array<i64: 2>, scalar_prefetch = 0 : i64, scratch_operands = 0 : i64, tpu.core_type = #tpu.core_type<tc>, window_params = [{transform_indices = @transform_0, window_bounds = array<i64: 1, 32, 256>}, {transform_indices = @transform_1, window_bounds = array<i64: 1, 1, 256>}, {pipeline_mode = #tpu.pipeline_mode<synchronous>, transform_indices = @transform_2, window_bounds = array<i64: 1, 256>}, {pipeline_mode = #tpu.pipeline_mode<synchronous>, transform_indices = @transform_3, window_bounds = array<i64: 32, 32>}, {pipeline_mode = #tpu.pipeline_mode<synchronous>, transform_indices = @transform_4, window_bounds = array<i64: 32, 1>}, {pipeline_mode = #tpu.pipeline_mode<synchronous>, transform_indices = @transform_5, window_bounds = array<i64: 16, 256>}, {pipeline_mode = #tpu.pipeline_mode<synchronous>, transform_indices = @transform_6, window_bounds = array<i64: 16, 16>}, {pipeline_mode = #tpu.pipeline_mode<synchronous>, transform_indices = @transform_7, window_bounds = array<i64: 1, 16>}, {pipeline_mode = #tpu.pipeline_mode<synchronous>, transform_indices = @transform_8, window_bounds = array<i64: 16, 16>}, {pipeline_mode = #tpu.pipeline_mode<synchronous>, transform_indices = @transform_9, window_bounds = array<i64: 32, 16>}, {transform_indices = @transform_10, window_bounds = array<i64: 1, 32, 256>}]} {
    %c0 = arith.constant 0 : index
    %c0_0 = arith.constant 0 : index
    %0 = vector.load %arg4[%c0, %c0_0] : memref<32x32xbf16, #tpu.memory_space<vmem>>, vector<32x32xbf16>
    %c0_1 = arith.constant 0 : index
    %c0_2 = arith.constant 0 : index
    %1 = vector.load %arg5[%c0_1, %c0_2] : memref<32x1xf32, #tpu.memory_space<vmem>>, vector<32x1xf32>
    %c0_3 = arith.constant 0 : index
    %c0_4 = arith.constant 0 : index
    %2 = vector.load %arg6[%c0_3, %c0_4] : memref<16x256xbf16, #tpu.memory_space<vmem>>, vector<16x256xbf16>
    %c0_5 = arith.constant 0 : index
    %c0_6 = arith.constant 0 : index
    %3 = vector.load %arg3[%c0_5, %c0_6] : memref<1x256xf32, #tpu.memory_space<vmem>>, vector<1x256xf32>
    %c0_7 = arith.constant 0 : index
    %c0_8 = arith.constant 0 : index
    %4 = vector.load %arg7[%c0_7, %c0_8] : memref<16x16xf32, #tpu.memory_space<vmem>>, vector<16x16xf32>
    %c0_9 = arith.constant 0 : index
    %c0_10 = arith.constant 0 : index
    %5 = vector.load %arg8[%c0_9, %c0_10] : memref<1x16xf32, #tpu.memory_space<vmem>>, vector<1x16xf32>
    %c0_11 = arith.constant 0 : index
    %c0_12 = arith.constant 0 : index
    %6 = vector.load %arg9[%c0_11, %c0_12] : memref<16x16xf32, #tpu.memory_space<vmem>>, vector<16x16xf32>
    %c0_13 = arith.constant 0 : index
    %c0_14 = arith.constant 0 : index
    %7 = vector.load %arg10[%c0_13, %c0_14] : memref<32x16xf32, #tpu.memory_space<vmem>>, vector<32x16xf32>
    %c0_i32 = arith.constant 0 : i32
    %8 = arith.index_cast %c0_i32 : i32 to index
    %c0_15 = arith.constant 0 : index
    %c0_16 = arith.constant 0 : index
    %9 = vector.load %arg1[%8, %c0_15, %c0_16] : memref<1x32x256xf32, #tpu.memory_space<vmem>>, vector<1x32x256xf32>
    %10 = vector.shape_cast %9 : vector<1x32x256xf32> to vector<32x256xf32>
    %11 = arith.truncf %10 : vector<32x256xf32> to vector<32x256xbf16>
    %12 = arith.index_cast %c0_i32 : i32 to index
    %c0_17 = arith.constant 0 : index
    %c0_18 = arith.constant 0 : index
    %13 = vector.load %arg2[%12, %c0_17, %c0_18] : memref<1x1x256xbf16, #tpu.memory_space<vmem>>, vector<1x1x256xbf16>
    %14 = vector.shape_cast %13 : vector<1x1x256xbf16> to vector<1x256xbf16>
    %15 = arith.extf %14 : vector<1x256xbf16> to vector<1x256xf32>
    %cst = arith.constant dense<0.000000e+00> : vector<32x256xf32>
    %16 = tpu.matmul %0, %11, %cst {dimension_numbers = #tpu.dot_dimension_numbers<[1], [0], [0], [1], [0, 0, 1, 1], [], []>} : vector<32x32xbf16>, vector<32x256xbf16>, vector<32x256xf32> -> vector<32x256xf32>
    %17 = vector.broadcast %1 : vector<32x1xf32> to vector<32x256xf32>
    %18 = arith.addf %16, %17 : vector<32x256xf32>
    %19 = vector.extract_strided_slice %18 {offsets = [0, 0], sizes = [16, 256], strides = [1, 1]} : vector<32x256xf32> to vector<16x256xf32>
    %20 = vector.broadcast %3 : vector<1x256xf32> to vector<16x256xf32>
    %21 = arith.mulf %19, %20 : vector<16x256xf32>
    %22 = vector.extract_strided_slice %18 {offsets = [16, 0], sizes = [16, 256], strides = [1, 1]} : vector<32x256xf32> to vector<16x256xf32>
    %23 = vector.broadcast %15 : vector<1x256xf32> to vector<16x256xf32>
    %24 = arith.mulf %22, %23 : vector<16x256xf32>
    %25 = arith.truncf %24 : vector<16x256xf32> to vector<16x256xbf16>
    %cst_19 = arith.constant dense<0.000000e+00> : vector<16x16xf32>
    %26 = tpu.matmul %2, %25, %cst_19 {dimension_numbers = #tpu.dot_dimension_numbers<[1], [1], [0], [0], [0, 0, 1, 0], [], []>} : vector<16x256xbf16>, vector<16x256xbf16>, vector<16x16xf32> -> vector<16x16xf32>
    %27 = arith.truncf %22 : vector<16x256xf32> to vector<16x256xbf16>
    %28 = arith.truncf %26 : vector<16x16xf32> to vector<16x16xbf16>
    %cst_20 = arith.constant dense<0.000000e+00> : vector<16x256xf32>
    %29 = tpu.matmul %28, %27, %cst_20 {dimension_numbers = #tpu.dot_dimension_numbers<[1], [0], [0], [1], [0, 0, 1, 1], [], []>} : vector<16x16xbf16>, vector<16x256xbf16>, vector<16x256xf32> -> vector<16x256xf32>
    %cst_21 = arith.constant dense<0xFF800000> : vector<256xf32>
    %30 = vector.multi_reduction <maximumf>, %29, %cst_21 [0] : vector<16x256xf32> to vector<256xf32>
    %31 = vector.shape_cast %30 : vector<256xf32> to vector<1x256xf32>
    %32 = vector.broadcast %31 : vector<1x256xf32> to vector<16x256xf32>
    %33 = arith.subf %29, %32 : vector<16x256xf32>
    %34 = arith.truncf %33 : vector<16x256xf32> to vector<16x256xbf16>
    %35 = math.exp %34 : vector<16x256xbf16>
    %36 = arith.extf %35 : vector<16x256xbf16> to vector<16x256xf32>
    %cst_22 = arith.constant dense<0.000000e+00> : vector<256xf32>
    %37 = vector.multi_reduction <add>, %36, %cst_22 [0] : vector<16x256xf32> to vector<256xf32>
    %38 = vector.shape_cast %37 : vector<256xf32> to vector<1x256xf32>
    %39 = tpu.reciprocal %38 {approx = true} : vector<1x256xf32> -> vector<1x256xf32>
    %40 = vector.broadcast %39 : vector<1x256xf32> to vector<16x256xf32>
    %41 = arith.mulf %36, %40 : vector<16x256xf32>
    %42 = arith.truncf %41 : vector<16x256xf32> to vector<16x256xbf16>
    %43 = arith.truncf %21 : vector<16x256xf32> to vector<16x256xbf16>
    %cst_23 = arith.constant dense<0.000000e+00> : vector<16x16xf32>
    %44 = tpu.matmul %43, %42, %cst_23 {dimension_numbers = #tpu.dot_dimension_numbers<[1], [1], [0], [0], [0, 0, 1, 0], [], []>} : vector<16x256xbf16>, vector<16x256xbf16>, vector<16x16xf32> -> vector<16x16xf32>
    %cst_24 = arith.constant dense<0.000000e+00> : vector<16x16xf32>
    %45 = tpu.matmul %44, %4, %cst_24 {dimension_numbers = #tpu.dot_dimension_numbers<[1], [0], [0], [1], [0, 0, 1, 1], [], []>} : vector<16x16xf32>, vector<16x16xf32>, vector<16x16xf32> -> vector<16x16xf32>
    %46 = vector.broadcast %5 : vector<1x16xf32> to vector<16x16xf32>
    %47 = arith.addf %45, %46 : vector<16x16xf32>
    %48 = arith.subf %47, %44 : vector<16x16xf32>
    %cst_25 = arith.constant dense<0.000000e+00> : vector<16x16xf32>
    %49 = tpu.matmul %6, %48, %cst_25 {dimension_numbers = #tpu.dot_dimension_numbers<[1], [0], [0], [1], [0, 0, 1, 1], [], []>} : vector<16x16xf32>, vector<16x16xf32>, vector<16x16xf32> -> vector<16x16xf32>
    %cst_26 = arith.constant 0.000000e+00 : f32
    %50 = vector.broadcast %cst_26 : f32 to vector<16x16xf32>
    %51 = arith.maximumf %49, %50 : vector<16x16xf32>
    %cst_27 = arith.constant dense<0.000000e+00> : vector<32x16xf32>
    %52 = tpu.matmul %7, %51, %cst_27 {dimension_numbers = #tpu.dot_dimension_numbers<[1], [0], [0], [1], [0, 0, 1, 1], [], []>} : vector<32x16xf32>, vector<16x16xf32>, vector<32x16xf32> -> vector<32x16xf32>
    %53 = arith.truncf %52 : vector<32x16xf32> to vector<32x16xbf16>
    %cst_28 = arith.constant dense<0.000000e+00> : vector<32x256xf32>
    %54 = tpu.matmul %53, %42, %cst_28 {dimension_numbers = #tpu.dot_dimension_numbers<[1], [0], [0], [1], [0, 0, 1, 1], [], []>} : vector<32x16xbf16>, vector<16x256xbf16>, vector<32x256xf32> -> vector<32x256xf32>
    %55 = arith.index_cast %c0_i32 : i32 to index
    %c0_29 = arith.constant 0 : index
    %c0_30 = arith.constant 0 : index
    %56 = vector.load %arg1[%55, %c0_29, %c0_30] : memref<1x32x256xf32, #tpu.memory_space<vmem>>, vector<1x32x256xf32>
    %57 = vector.shape_cast %56 : vector<1x32x256xf32> to vector<32x256xf32>
    %58 = arith.addf %54, %57 : vector<32x256xf32>
    %59 = arith.index_cast %c0_i32 : i32 to index
    %c0_31 = arith.constant 0 : index
    %c0_32 = arith.constant 0 : index
    %60 = vector.load %arg11[%59, %c0_31, %c0_32] : memref<1x32x256xf32, #tpu.memory_space<vmem>>, vector<1x32x256xf32>
    %61 = vector.shape_cast %60 : vector<1x32x256xf32> to vector<32x256xf32>
    %62 = vector.shape_cast %58 : vector<32x256xf32> to vector<1x32x256xf32>
    tpu.vector_store %arg11[%59, %c0_31, %c0_32], %62 {strides = array<i32>} : memref<1x32x256xf32, #tpu.memory_space<vmem>>, vector<1x32x256xf32>,
    %c1_i32 = arith.constant 1 : i32
    return
  }
  func.func @transform_0(%arg0: i32) -> (i32, i32, i32) {
    %c0_i32 = arith.constant 0 : i32
    %c0_i32_0 = arith.constant 0 : i32
    %c0_i32_1 = arith.constant 0 : i32
    return %arg0, %c0_i32, %c0_i32_0 : i32, i32, i32
  }
  func.func @transform_1(%arg0: i32) -> (i32, i32, i32) {
    %c0_i32 = arith.constant 0 : i32
    %c0_i32_0 = arith.constant 0 : i32
    %c0_i32_1 = arith.constant 0 : i32
    return %arg0, %c0_i32, %c0_i32_0 : i32, i32, i32
  }
  func.func @transform_2(%arg0: i32) -> (i32, i32) {
    %c0_i32 = arith.constant 0 : i32
    %c0_i32_0 = arith.constant 0 : i32
    %c0_i32_1 = arith.constant 0 : i32
    return %c0_i32, %c0_i32_0 : i32, i32
  }
  func.func @transform_3(%arg0: i32) -> (i32, i32) {
    %c0_i32 = arith.constant 0 : i32
    %c0_i32_0 = arith.constant 0 : i32
    %c0_i32_1 = arith.constant 0 : i32
    return %c0_i32, %c0_i32_0 : i32, i32
  }
  func.func @transform_4(%arg0: i32) -> (i32, i32) {
    %c0_i32 = arith.constant 0 : i32
    %c0_i32_0 = arith.constant 0 : i32
    %c0_i32_1 = arith.constant 0 : i32
    return %c0_i32, %c0_i32_0 : i32, i32
  }
  func.func @transform_5(%arg0: i32) -> (i32, i32) {
    %c0_i32 = arith.constant 0 : i32
    %c0_i32_0 = arith.constant 0 : i32
    %c0_i32_1 = arith.constant 0 : i32
    return %c0_i32, %c0_i32_0 : i32, i32
  }
  func.func @transform_6(%arg0: i32) -> (i32, i32) {
    %c0_i32 = arith.constant 0 : i32
    %c0_i32_0 = arith.constant 0 : i32
    %c0_i32_1 = arith.constant 0 : i32
    return %c0_i32, %c0_i32_0 : i32, i32
  }
  func.func @transform_7(%arg0: i32) -> (i32, i32) {
    %c0_i32 = arith.constant 0 : i32
    %c0_i32_0 = arith.constant 0 : i32
    %c0_i32_1 = arith.constant 0 : i32
    return %c0_i32, %c0_i32_0 : i32, i32
  }
  func.func @transform_8(%arg0: i32) -> (i32, i32) {
    %c0_i32 = arith.constant 0 : i32
    %c0_i32_0 = arith.constant 0 : i32
    %c0_i32_1 = arith.constant 0 : i32
    return %c0_i32, %c0_i32_0 : i32, i32
  }
  func.func @transform_9(%arg0: i32) -> (i32, i32) {
    %c0_i32 = arith.constant 0 : i32
    %c0_i32_0 = arith.constant 0 : i32
    %c0_i32_1 = arith.constant 0 : i32
    return %c0_i32, %c0_i32_0 : i32, i32
  }
  func.func @transform_10(%arg0: i32) -> (i32, i32, i32) {
    %c0_i32 = arith.constant 0 : i32
    %c0_i32_0 = arith.constant 0 : i32
    %c0_i32_1 = arith.constant 0 : i32
    return %arg0, %c0_i32, %c0_i32_0 : i32, i32, i32
  }
}

</mosaic_0001>

<llo_original>
// kernel: tpu_custom_call.1
$region0: #{tpu_custom_call.1}
  #allocation0 [shape = 'u32[]', space=smem, size = 0x4, offset = 0x4, fixed_abs, tag = 'smem constant byte address 0x4 - core index']
  #allocation1 [shape = 'u32[144,128]{1,0:T(1,128)}', space=vmem, size = 0x12000, scoped, tag = 'internal scratch']
  %s0 = inlined_call_operand.hbm [shape: f32[2,32,256], index: 0, kind: input, shape index: {}]
  %s1 = inlined_call_operand.vmem [shape: bf16[2,1,256], index: 1, kind: input, shape index: {}]
  %s2 = inlined_call_operand.vmem [shape: f32[1,256], index: 2, kind: input, shape index: {}]
  %s3 = inlined_call_operand.vmem [shape: bf16[32,32], index: 3, kind: input, shape index: {}]
  %s4 = inlined_call_operand.vmem [shape: f32[32,1], index: 4, kind: input, shape index: {}]
  %s5 = inlined_call_operand.vmem [shape: bf16[16,256], index: 5, kind: input, shape index: {}]
  %s6 = inlined_call_operand.vmem [shape: f32[16,16], index: 6, kind: input, shape index: {}]
  %s7 = inlined_call_operand.vmem [shape: f32[1,16], index: 7, kind: input, shape index: {}]
  %s8 = inlined_call_operand.vmem [shape: f32[16,16], index: 8, kind: input, shape index: {}]
  %s9 = inlined_call_operand.vmem [shape: f32[32,16], index: 9, kind: input, shape index: {}]
  %s10 = inlined_call_operand.hbm [shape: f32[2,32,256], index: 10, kind: output, shape index: {}]
  %s11 = sld [smem:[#allocation0]]
  $region77: #{tpu_custom_call.1} parent=0
    _
  %s13 = ssub.s32 1, %s11
  %s14 = scalar_select 0, %s13, %s11
  $region1: #{tpu_custom_call.1} parent=0
    #allocation2 [shape = 'u8[65536]{0}', space=vmem, size = 0x10000, scoped, tag = 'input window, operand 0']
    #allocation3 [shape = 's32[2]{0}', space=sflag, size = 0x8, scoped, tag = 'scoped memory for tpu_custom_call.1']
    #allocation4 [shape = 's32[2]{0}', space=sflag, size = 0x8, scoped, tag = 'scoped memory for tpu_custom_call.1']
    #allocation5 [shape = 'u8[65536]{0}', space=vmem, size = 0x10000, scoped, tag = 'output window, operand 0']
    %15 = vsyncpa [#allocation3], 0
    %s16 = scalar_lea.sflag [#allocation3], 1
    %17 = vsyncpa %s16, 0
    %18 = vsyncpa [#allocation4], 0
    %s19 = scalar_lea.sflag [#allocation4], 1
    %20 = vsyncpa %s19, 0
    loop: start=0, step=1, limit=4
    $region2: #{tpu_custom_call.1} parent=1 // loop_pre_header
      _
    $region3: #{tpu_custom_call.1} parent=1 // loop_header
      %s22 = sphi 0, %s26
      %p23 = scmp.ge.s32.totalorder %s22, 4
      %s32 = sphi 0, %s34
      %s35 = sphi 0, %s32
      %s36 = sphi 0, %s35
      %s52 = sphi 0, %s36
      %s58 = sphi 0, %s60
      %s61 = sphi 0, %s58
      %s62 = sphi 0, %s61
      %s78 = sphi 0, %s62
      %s82 = sphi 0, %s82
      %s84 = sphi 0, %s82
      %s85 = sphi 0, %s84
      %s99 = sphi 0, %s85
      %s103 = sphi 0, %s103
      %s105 = sphi 0, %s103
      %s106 = sphi 0, %s105
      %s120 = sphi 0, %s106
      %s124 = sphi 0, %s124
      %s126 = sphi 0, %s124
      %s127 = sphi 0, %s126
      %s141 = sphi 0, %s127
      %s145 = sphi 0, %s145
      %s147 = sphi 0, %s145
      %s148 = sphi 0, %s147
      %s162 = sphi 0, %s148
      %s166 = sphi 0, %s166
      %s168 = sphi 0, %s166
      %s169 = sphi 0, %s168
      %s183 = sphi 0, %s169
      %s187 = sphi 0, %s187
      %s189 = sphi 0, %s187
      %s190 = sphi 0, %s189
      %s204 = sphi 0, %s190
      %s208 = sphi 0, %s208
      %s210 = sphi 0, %s208
      %s211 = sphi 0, %s210
      %s225 = sphi 0, %s211
      %s229 = sphi 0, %s229
      %s231 = sphi 0, %s229
      %s232 = sphi 0, %s231
      %s246 = sphi 0, %s232
      %s252 = sphi 0, %s254
      %s255 = sphi 0, %s252
      %s256 = sphi 0, %s255
      %s272 = sphi 0, %s256
    $region4: #{tpu_custom_call.1} parent=1 // loop_header_branch
      %25 = sbr.rel (%p23) target = $region8
    $region5: #{tpu_custom_call.1} parent=1 // loop_body
      %s27 = ssub.s32 %s22, 1
      %s28 = ssub.s32 %s22, 2
      %s29 = sadd.s32 %s22, 1
      %s30 = ssub.s32 %s22, %s29
      %p31 = scmp.eq.s32.totalorder %s30, 0
      %s33 = sadd.s32 %s32, 1
      %s34 = scalar_select %p31, %s32, %s33
      %p37 = pneg %p31
      %p38 = scmp.eq.s32.totalorder %s22, 1
      %p39 = por %p37, %p38
      %p40 = scmp.ne.s32.totalorder %s32, %s35
      %p41 = scmp.eq.s32.totalorder %s22, 0
      %p42 = por %p40, %p41
      %p43 = scmp.ne.s32.totalorder %s32, %s35
      %p44 = scmp.eq.s32.totalorder %s27, 1
      %p45 = por %p43, %p44
      %p46 = scmp.ne.s32.totalorder %s35, %s36
      %p47 = scmp.eq.s32.totalorder %s27, 0
      %p48 = por %p46, %p47
      %p49 = scmp.ne.s32.totalorder %s35, %s36
      %p50 = scmp.eq.s32.totalorder %s28, 1
      %p51 = por %p49, %p50
      %p53 = scmp.ne.s32.totalorder %s36, %s52
      %p54 = scmp.eq.s32.totalorder %s28, 0
      %p55 = por %p53, %p54
      %s56 = ssub.s32 %s22, %s29
      %p57 = scmp.eq.s32.totalorder %s56, 0
      %s59 = sadd.s32 %s58, 1
      %s60 = scalar_select %p57, %s58, %s59
      %p63 = pneg %p57
      %p64 = scmp.eq.s32.totalorder %s22, 1
      %p65 = por %p63, %p64
      %p66 = scmp.ne.s32.totalorder %s58, %s61
      %p67 = scmp.eq.s32.totalorder %s22, 0
      %p68 = por %p66, %p67
      %p69 = scmp.ne.s32.totalorder %s58, %s61
      %p70 = scmp.eq.s32.totalorder %s27, 1
      %p71 = por %p69, %p70
      %p72 = scmp.ne.s32.totalorder %s61, %s62
      %p73 = scmp.eq.s32.totalorder %s27, 0
      %p74 = por %p72, %p73
      %p75 = scmp.ne.s32.totalorder %s61, %s62
      %p76 = scmp.eq.s32.totalorder %s28, 1
      %p77 = por %p75, %p76
      %p79 = scmp.ne.s32.totalorder %s62, %s78
      %p80 = scmp.eq.s32.totalorder %s28, 0
      %p81 = por %p79, %p80
      %s83 = sadd.s32 %s82, 1
      %p86 = scmp.eq.s32.totalorder %s22, 1
      %p87 = scmp.ne.s32.totalorder %s82, %s84
      %p88 = scmp.eq.s32.totalorder %s22, 0
      %p89 = por %p87, %p88
      %p90 = scmp.ne.s32.totalorder %s82, %s84
      %p91 = scmp.eq.s32.totalorder %s27, 1
      %p92 = por %p90, %p91
      %p93 = scmp.ne.s32.totalorder %s84, %s85
      %p94 = scmp.eq.s32.totalorder %s27, 0
      %p95 = por %p93, %p94
      %p96 = scmp.ne.s32.totalorder %s84, %s85
      %p97 = scmp.eq.s32.totalorder %s28, 1
      %p98 = por %p96, %p97
      %p100 = scmp.ne.s32.totalorder %s85, %s99
      %p101 = scmp.eq.s32.totalorder %s28, 0
      %p102 = por %p100, %p101
      %s104 = sadd.s32 %s103, 1
      %p107 = scmp.eq.s32.totalorder %s22, 1
      %p108 = scmp.ne.s32.totalorder %s103, %s105
      %p109 = scmp.eq.s32.totalorder %s22, 0
      %p110 = por %p108, %p109
      %p111 = scmp.ne.s32.totalorder %s103, %s105
      %p112 = scmp.eq.s32.totalorder %s27, 1
      %p113 = por %p111, %p112
      %p114 = scmp.ne.s32.totalorder %s105, %s106
      %p115 = scmp.eq.s32.totalorder %s27, 0
      %p116 = por %p114, %p115
      %p117 = scmp.ne.s32.totalorder %s105, %s106
      %p118 = scmp.eq.s32.totalorder %s28, 1
      %p119 = por %p117, %p118
      %p121 = scmp.ne.s32.totalorder %s106, %s120
      %p122 = scmp.eq.s32.totalorder %s28, 0
      %p123 = por %p121, %p122
      %s125 = sadd.s32 %s124, 1
      %p128 = scmp.eq.s32.totalorder %s22, 1
      %p129 = scmp.ne.s32.totalorder %s124, %s126
      %p130 = scmp.eq.s32.totalorder %s22, 0
      %p131 = por %p129, %p130
      %p132 = scmp.ne.s32.totalorder %s124, %s126
      %p133 = scmp.eq.s32.totalorder %s27, 1
      %p134 = por %p132, %p133
      %p135 = scmp.ne.s32.totalorder %s126, %s127
      %p136 = scmp.eq.s32.totalorder %s27, 0
      %p137 = por %p135, %p136
      %p138 = scmp.ne.s32.totalorder %s126, %s127
      %p139 = scmp.eq.s32.totalorder %s28, 1
      %p140 = por %p138, %p139
      %p142 = scmp.ne.s32.totalorder %s127, %s141
      %p143 = scmp.eq.s32.totalorder %s28, 0
      %p144 = por %p142, %p143
      %s146 = sadd.s32 %s145, 1
      %p149 = scmp.eq.s32.totalorder %s22, 1
      %p150 = scmp.ne.s32.totalorder %s145, %s147
      %p151 = scmp.eq.s32.totalorder %s22, 0
      %p152 = por %p150, %p151
      %p153 = scmp.ne.s32.totalorder %s145, %s147
      %p154 = scmp.eq.s32.totalorder %s27, 1
      %p155 = por %p153, %p154
      %p156 = scmp.ne.s32.totalorder %s147, %s148
      %p157 = scmp.eq.s32.totalorder %s27, 0
      %p158 = por %p156, %p157
      %p159 = scmp.ne.s32.totalorder %s147, %s148
      %p160 = scmp.eq.s32.totalorder %s28, 1
      %p161 = por %p159, %p160
      %p163 = scmp.ne.s32.totalorder %s148, %s162
      %p164 = scmp.eq.s32.totalorder %s28, 0
      %p165 = por %p163, %p164
      %s167 = sadd.s32 %s166, 1
      %p170 = scmp.eq.s32.totalorder %s22, 1
      %p171 = scmp.ne.s32.totalorder %s166, %s168
      %p172 = scmp.eq.s32.totalorder %s22, 0
      %p173 = por %p171, %p172
      %p174 = scmp.ne.s32.totalorder %s166, %s168
      %p175 = scmp.eq.s32.totalorder %s27, 1
      %p176 = por %p174, %p175
      %p177 = scmp.ne.s32.totalorder %s168, %s169
      %p178 = scmp.eq.s32.totalorder %s27, 0
      %p179 = por %p177, %p178
      %p180 = scmp.ne.s32.totalorder %s168, %s169
      %p181 = scmp.eq.s32.totalorder %s28, 1
      %p182 = por %p180, %p181
      %p184 = scmp.ne.s32.totalorder %s169, %s183
      %p185 = scmp.eq.s32.totalorder %s28, 0
      %p186 = por %p184, %p185
      %s188 = sadd.s32 %s187, 1
      %p191 = scmp.eq.s32.totalorder %s22, 1
      %p192 = scmp.ne.s32.totalorder %s187, %s189
      %p193 = scmp.eq.s32.totalorder %s22, 0
      %p194 = por %p192, %p193
      %p195 = scmp.ne.s32.totalorder %s187, %s189
      %p196 = scmp.eq.s32.totalorder %s27, 1
      %p197 = por %p195, %p196
      %p198 = scmp.ne.s32.totalorder %s189, %s190
      %p199 = scmp.eq.s32.totalorder %s27, 0
      %p200 = por %p198, %p199
      %p201 = scmp.ne.s32.totalorder %s189, %s190
      %p202 = scmp.eq.s32.totalorder %s28, 1
      %p203 = por %p201, %p202
      %p205 = scmp.ne.s32.totalorder %s190, %s204
      %p206 = scmp.eq.s32.totalorder %s28, 0
      %p207 = por %p205, %p206
      %s209 = sadd.s32 %s208, 1
      %p212 = scmp.eq.s32.totalorder %s22, 1
      %p213 = scmp.ne.s32.totalorder %s208, %s210
      %p214 = scmp.eq.s32.totalorder %s22, 0
      %p215 = por %p213, %p214
      %p216 = scmp.ne.s32.totalorder %s208, %s210
      %p217 = scmp.eq.s32.totalorder %s27, 1
      %p218 = por %p216, %p217
      %p219 = scmp.ne.s32.totalorder %s210, %s211
      %p220 = scmp.eq.s32.totalorder %s27, 0
      %p221 = por %p219, %p220
      %p222 = scmp.ne.s32.totalorder %s210, %s211
      %p223 = scmp.eq.s32.totalorder %s28, 1
      %p224 = por %p222, %p223
      %p226 = scmp.ne.s32.totalorder %s211, %s225
      %p227 = scmp.eq.s32.totalorder %s28, 0
      %p228 = por %p226, %p227
      %s230 = sadd.s32 %s229, 1
      %p233 = scmp.eq.s32.totalorder %s22, 1
      %p234 = scmp.ne.s32.totalorder %s229, %s231
      %p235 = scmp.eq.s32.totalorder %s22, 0
      %p236 = por %p234, %p235
      %p237 = scmp.ne.s32.totalorder %s229, %s231
      %p238 = scmp.eq.s32.totalorder %s27, 1
      %p239 = por %p237, %p238
      %p240 = scmp.ne.s32.totalorder %s231, %s232
      %p241 = scmp.eq.s32.totalorder %s27, 0
      %p242 = por %p240, %p241
      %p243 = scmp.ne.s32.totalorder %s231, %s232
      %p244 = scmp.eq.s32.totalorder %s28, 1
      %p245 = por %p243, %p244
      %p247 = scmp.ne.s32.totalorder %s232, %s246
      %p248 = scmp.eq.s32.totalorder %s28, 0
      %p249 = por %p247, %p248
      %s250 = ssub.s32 %s22, %s29
      %p251 = scmp.eq.s32.totalorder %s250, 0
      %s253 = sadd.s32 %s252, 1
      %s254 = scalar_select %p251, %s252, %s253
      %p257 = pneg %p251
      %p258 = scmp.eq.s32.totalorder %s22, 1
      %p259 = por %p257, %p258
      %p260 = scmp.ne.s32.totalorder %s252, %s255
      %p261 = scmp.eq.s32.totalorder %s22, 0
      %p262 = por %p260, %p261
      %p263 = scmp.ne.s32.totalorder %s252, %s255
      %p264 = scmp.eq.s32.totalorder %s27, 1
      %p265 = por %p263, %p264
      %p266 = scmp.ne.s32.totalorder %s255, %s256
      %p267 = scmp.eq.s32.totalorder %s27, 0
      %p268 = por %p266, %p267
      %p269 = scmp.ne.s32.totalorder %s255, %s256
      %p270 = scmp.eq.s32.totalorder %s28, 1
      %p271 = por %p269, %p270
      %p273 = scmp.ne.s32.totalorder %s256, %s272
      %p274 = scmp.eq.s32.totalorder %s28, 0
      %p275 = por %p273, %p274
      %p276 = scmp.le.s32.totalorder 1, %s22
      %p277 = scmp.lt.s32.totalorder %s22, 3
      %p278 = pnand %p276, %p277
      %p279 = pneg %p278
      // Predicated region
      $region9: #{tpu_custom_call.1} parent=5 // pred_check
        _
      $region10: #{tpu_custom_call.1} parent=5 // pred_check_branch
        %281 = sbr.rel (%p278) target = $region12
      $region11: #{tpu_custom_call.1} parent=5 // pred_region
        %s282 = ssub.s32 %s22, 1
        // Predicated region
        $region13: #{tpu_custom_call.1} parent=11 // pred_check
          %p283 = pneg %p95
        $region14: #{tpu_custom_call.1} parent=11 // pred_check_branch
          %285 = sbr.rel (%p283) target = $region16
        $region15: #{tpu_custom_call.1} parent=11 // pred_region
          _
        $region16: #{tpu_custom_call.1} parent=11 // pred_fallthru
          _
        // Predicated region
        $region17: #{tpu_custom_call.1} parent=11 // pred_check
          %p286 = pneg %p116
        $region18: #{tpu_custom_call.1} parent=11 // pred_check_branch
          %288 = sbr.rel (%p286) target = $region20
        $region19: #{tpu_custom_call.1} parent=11 // pred_region
          _
        $region20: #{tpu_custom_call.1} parent=11 // pred_fallthru
          _
        // Predicated region
        $region21: #{tpu_custom_call.1} parent=11 // pred_check
          %p289 = pneg %p137
        $region22: #{tpu_custom_call.1} parent=11 // pred_check_branch
          %291 = sbr.rel (%p289) target = $region24
        $region23: #{tpu_custom_call.1} parent=11 // pred_region
          _
        $region24: #{tpu_custom_call.1} parent=11 // pred_fallthru
          _
        // Predicated region
        $region25: #{tpu_custom_call.1} parent=11 // pred_check
          %p292 = pneg %p158
        $region26: #{tpu_custom_call.1} parent=11 // pred_check_branch
          %294 = sbr.rel (%p292) target = $region28
        $region27: #{tpu_custom_call.1} parent=11 // pred_region
          _
        $region28: #{tpu_custom_call.1} parent=11 // pred_fallthru
          _
        // Predicated region
        $region29: #{tpu_custom_call.1} parent=11 // pred_check
          %p295 = pneg %p179
        $region30: #{tpu_custom_call.1} parent=11 // pred_check_branch
          %297 = sbr.rel (%p295) target = $region32
        $region31: #{tpu_custom_call.1} parent=11 // pred_region
          _
        $region32: #{tpu_custom_call.1} parent=11 // pred_fallthru
          _
        // Predicated region
        $region33: #{tpu_custom_call.1} parent=11 // pred_check
          %p298 = pneg %p200
        $region34: #{tpu_custom_call.1} parent=11 // pred_check_branch
          %300 = sbr.rel (%p298) target = $region36
        $region35: #{tpu_custom_call.1} parent=11 // pred_region
          _
        $region36: #{tpu_custom_call.1} parent=11 // pred_fallthru
          _
        // Predicated region
        $region37: #{tpu_custom_call.1} parent=11 // pred_check
          %p301 = pneg %p221
        $region38: #{tpu_custom_call.1} parent=11 // pred_check_branch
          %303 = sbr.rel (%p301) target = $region40
        $region39: #{tpu_custom_call.1} parent=11 // pred_region
          _
        $region40: #{tpu_custom_call.1} parent=11 // pred_fallthru
          _
        // Predicated region
        $region41: #{tpu_custom_call.1} parent=11 // pred_check
          %p304 = pneg %p242
        $region42: #{tpu_custom_call.1} parent=11 // pred_check_branch
          %306 = sbr.rel (%p304) target = $region44
        $region43: #{tpu_custom_call.1} parent=11 // pred_region
          _
        $region44: #{tpu_custom_call.1} parent=11 // pred_fallthru
          _
      $region12: #{tpu_custom_call.1} parent=5 // pred_fallthru
        _
      %p307 = scmp.lt.s32.totalorder %s22, 2
      // Predicated region
      $region45: #{tpu_custom_call.1} parent=5 // pred_check
        %p308 = pneg %p307
      $region46: #{tpu_custom_call.1} parent=5 // pred_check_branch
        %310 = sbr.rel (%p308) target = $region48
      $region47: #{tpu_custom_call.1} parent=5 // pred_region
        // Predicated region
        $region49: #{tpu_custom_call.1} parent=47 // pred_check
          %p311 = pneg %p42
        $region50: #{tpu_custom_call.1} parent=47 // pred_check_branch
          %313 = sbr.rel (%p311) target = $region52
        $region51: #{tpu_custom_call.1} parent=47 // pred_region
          %s314 = sand.u32 %s32, 1
          %s315 = scalar_lea.sflag [#allocation3], %s314
          %s316 = sand.u32 %s32, 1
          %s317 = smul.addr %s316, 64
          %s318 = scalar_lea.vmem [#allocation2], %s317
          %s320 = ssub.s32 1024, 1024
          %321 = vsyncadd %s315, %s320
          %s322 = smul.addr %s22, 8
          %s323 = smul.addr %s322, 128
          %s324 = scalar_lea.hbm %s0, %s323
          %s325 = sshll.u32 %s318, 4
          %s326 = int_to_ptr.vmem [resolvable:$true] %s325
          %331 = dma.hbm_to_vmem [thread:$0]  %s324, 1024, %s326, %s315, 256, 256, 16
        $region52: #{tpu_custom_call.1} parent=47 // pred_fallthru
          _
        // Predicated region
        $region53: #{tpu_custom_call.1} parent=47 // pred_check
          %p332 = pneg %p68
        $region54: #{tpu_custom_call.1} parent=47 // pred_check_branch
          %334 = sbr.rel (%p332) target = $region56
        $region55: #{tpu_custom_call.1} parent=47 // pred_region
          %p335 = scmp.lt.s32.totalorder %s22, 1
          %s336 = scalar_select %p335, %s22, 1
          %s337 = smul.addr %s336, 2
          %s338 = scalar_lea.vmem %s1, %s337
        $region56: #{tpu_custom_call.1} parent=47 // pred_fallthru
          _
      $region48: #{tpu_custom_call.1} parent=5 // pred_fallthru
        _
      %p339 = scmp.le.s32.totalorder 1, %s22
      %p340 = scmp.lt.s32.totalorder %s22, 3
      %p341 = pnand %p339, %p340
      %p342 = pneg %p341
      // Predicated region
      $region57: #{tpu_custom_call.1} parent=5 // pred_check
        _
      $region58: #{tpu_custom_call.1} parent=5 // pred_check_branch
        %344 = sbr.rel (%p341) target = $region60
      $region59: #{tpu_custom_call.1} parent=5 // pred_region
        %s345 = ssub.s32 %s22, 1
        %s346 = sand.u32 %s35, 1
        %s347 = scalar_lea.sflag [#allocation3], %s346
        %s348 = sand.u32 %s35, 1
        %s349 = smul.addr %s348, 64
        %s350 = scalar_lea.vmem [#allocation2], %s349
        // Predicated region
        $region61: #{tpu_custom_call.1} parent=59 // pred_check
          %p351 = pneg %p48
        $region62: #{tpu_custom_call.1} parent=59 // pred_check_branch
          %353 = sbr.rel (%p351) target = $region64
        $region63: #{tpu_custom_call.1} parent=59 // pred_region
          %354 = dma.done %s347, 1024
        $region64: #{tpu_custom_call.1} parent=59 // pred_fallthru
          _
        %s355 = sand.u32 %s35, 1
        %s356 = scalar_lea.sflag [#allocation3], %s355
        %s357 = sand.u32 %s35, 1
        %s358 = smul.addr %s357, 64
        %s359 = scalar_lea.vmem [#allocation2], %s358
        %p360 = pneg %p48
        %p361 = pneg %p45
        %p362 = scmp.lt.s32.totalorder %s27, 1
        %s363 = scalar_select %p362, %s27, 1
        %s364 = smul.addr %s363, 2
        %s365 = scalar_lea.vmem %s1, %s364
        %p366 = pneg %p74
        %p367 = pneg %p71
        %p368 = pneg %p95
        %p369 = pneg %p92
        %p370 = pneg %p116
        %p371 = pneg %p113
        %p372 = pneg %p137
        %p373 = pneg %p134
        %p374 = pneg %p158
        %p375 = pneg %p155
        %p376 = pneg %p179
        %p377 = pneg %p176
        %p378 = pneg %p200
        %p379 = pneg %p197
        %p380 = pneg %p221
        %p381 = pneg %p218
        %p382 = pneg %p242
        %p383 = pneg %p239
        %p384 = pneg %p268
        %p385 = pneg %p265
        %s386 = sand.u32 %s255, 1
        %s387 = scalar_lea.sflag [#allocation4], %s386
        %s388 = sand.u32 %s255, 1
        %s389 = smul.addr %s388, 64
        %s390 = scalar_lea.vmem [#allocation5], %s389
        %p391 = scmp.lt.s32.totalorder %s27, 1
        %s392 = scalar_select %p391, %s27, 1
        %s393 = smul.addr %s392, 2
        %s394 = scalar_lea.vmem %s1, %s393
        %v396 = vld [vmem:[%s3] sm:$0xf]
        %v397 = vld [vmem:[%s3 + $0x4] sm:$0xf]
        %v398 = vld [vmem:[%s3 + $0x8] sm:$0xf]
        %v399 = vld [vmem:[%s3 + $0xc] sm:$0xf]
        %v400 = vld [vmem:[%s4] sm:$0xff]
        %v401 = vld [vmem:[%s4 + $0x8] sm:$0xff]
        %v402 = vld [vmem:[%s4 + $0x10] sm:$0xff]
        %v403 = vld [vmem:[%s4 + $0x18] sm:$0xff]
        %v404 = vld [vmem:[%s5] sm:$0xff]
        %v405 = vld [vmem:[%s5 + $0x8] sm:$0xff]
        %v406 = vld [vmem:[%s2] sm:$0x3]
        %v407 = vld [vmem:[%s6] sm:$0xff]
        %v408 = vld [vmem:[%s6 + $0x8] sm:$0xff]
        %v409 = vld [vmem:[%s7] sm:$0x1]
        %v410 = vld [vmem:[%s8] sm:$0xff]
        %v411 = vld [vmem:[%s8 + $0x8] sm:$0xff]
        %v412 = vld [vmem:[%s9] sm:$0xff]
        %v413 = vld [vmem:[%s9 + $0x8] sm:$0xff]
        %v414 = vld [vmem:[%s9 + $0x10] sm:$0xff]
        %v415 = vld [vmem:[%s9 + $0x18] sm:$0xff]
        %v416 = vld [vmem:[%s350] sm:$0xff]
        %v417 = vld [vmem:[%s350 + $0x8] sm:$0xff]
        %v418 = vld [vmem:[%s350 + $0x10] sm:$0xff]
        %v419 = vld [vmem:[%s350 + $0x18] sm:$0xff]
        %v420 = vld [vmem:[%s350 + $0x20] sm:$0xff]
        %v421 = vld [vmem:[%s350 + $0x28] sm:$0xff]
        %v422 = vld [vmem:[%s350 + $0x30] sm:$0xff]
        %v423 = vld [vmem:[%s350 + $0x38] sm:$0xff]
        %v424 = vpack.c.bf16 %v418, %v416
        %v425 = vpack.c.bf16 %v419, %v417
        %v426 = vpack.c.bf16 %v422, %v420
        %v427 = vpack.c.bf16 %v423, %v421
        %v428 = vld [vmem:[%s394] sm:$0x3]
        %v429 = vunpack.c.l.bf16 %v428
        %431 = vset.pattern.permute.xlu0 0
        %432 = vperm.xlu0 %431, %v400
        %v433 = vpop.permute.xlu0 %432
        %436 = vset.pattern.permute.xlu0 0
        %437 = vperm.xlu0 %436, %v401
        %v438 = vpop.permute.xlu0 %437
        %441 = vset.pattern.permute.xlu0 0
        %442 = vperm.xlu0 %441, %v402
        %v443 = vpop.permute.xlu0 %442
        %446 = vset.pattern.permute.xlu0 0
        %447 = vperm.xlu0 %446, %v403
        %v448 = vpop.permute.xlu0 %447
        %v454 = vunpack.c.l.b16 %v396
        %v455 = vunpack.c.l.b16 %v397
        %v456 = vunpack.c.l.b16 %v398
        %v457 = vunpack.c.l.b16 %v399
        %v458 = vpack.c.b16 %v455, %v454
        %v459 = vpack.c.b16 %v457, %v456
        %vm460 = vcmask 261120
        %v462 = vsel %vm460, %v458, 0
        %v465 = vsel %vm460, %v459, 0
        %467 = vmatprep.subr.bf16.mxu0 0
        %468 = vmatpush1.bf16.msra.mxu0 0
        %469 = vmatprep.subr.bf16.mxu0 0
        %470 = vmatpush1.bf16.msra.mxu0 0
        %471 = vmatprep.subr.bf16.mxu0 0
        %472 = vmatpush1.bf16.msra.mxu0 0
        %473 = vmatprep.subr.bf16.mxu0 0
        %474 = vmatpush1.bf16.msra.mxu0 0
        %475 = vmatprep.subr.bf16.mxu0 0
        %476 = vmatpush1.bf16.msra.mxu0 0
        %477 = vmatprep.subr.bf16.mxu0 0
        %478 = vmatpush1.bf16.msra.mxu0 0
        %479 = vmatprep.subr.bf16.mxu0 %v427
        %480 = vmatpush1.bf16.msra.mxu0 %v426
        %481 = vmatprep.subr.bf16.mxu0 %v425
        %482 = vmatpush1.bf16.msra.mxu0 %v424
        %483 = vmatprep.subr.bf16.mxu0 0
        %484 = vmatpush2.bf16.msra.mxu0 0
        %485 = vmatprep.subr.bf16.mxu0 0
        %486 = vmatpush2.bf16.msra.mxu0 0
        %487 = vmatprep.subr.bf16.mxu0 0
        %488 = vmatpush2.bf16.msra.mxu0 0
        %489 = vmatprep.subr.bf16.mxu0 0
        %490 = vmatpush2.bf16.msra.mxu0 0
        %491 = vmatprep.subr.bf16.mxu0 0
        %492 = vmatpush2.bf16.msra.mxu0 0
        %493 = vmatprep.subr.bf16.mxu0 0
        %494 = vmatpush2.bf16.msra.mxu0 0
        %495 = vmatprep.subr.bf16.mxu0 0
        %496 = vmatpush2.bf16.msra.mxu0 0
        %497 = vmatprep.subr.bf16.mxu0 0
        %498 = vmatpush2.bf16.msra.mxu0 0
        %499 = vmatprep.mubr.bf16.mxu0 0
        %500 = vmatmul.mubr.bf16.gmra.mxu0 %v462
        %v501 = vpop.f32.mrf.mxu0
        %v502 = vadd.f32 %v433, %v501
        %v503 = vpop.f32.mrf.mxu0
        %v504 = vadd.f32 %v433, %v503
        %v505 = vpop.f32.mrf.mxu0
        %v506 = vadd.f32 %v438, %v505
        %v507 = vpop.f32.mrf.mxu0
        %v508 = vadd.f32 %v438, %v507
        %509 = vmatprep.mubr.bf16.mxu0 0
        %510 = vmatmul.mubr.bf16.gmra.mxu0 %v465
        %v511 = vpop.f32.mrf.mxu0
        %v512 = vadd.f32 %v443, %v511
        %v513 = vpop.f32.mrf.mxu0
        %v514 = vadd.f32 %v443, %v513
        %v515 = vpop.f32.mrf.mxu0
        %v516 = vadd.f32 %v448, %v515
        %v517 = vpop.f32.mrf.mxu0
        %v518 = vadd.f32 %v448, %v517
        %519 = vdwg.mxu0
        %v521 = vlaneseq
        %v522 = vshrl.u32 %v521, 7
        %v523 = vsub.s32 0, %v522
        %v524 = vrot.slane %v406, %v523
        %v525 = vlaneseq
        %v526 = vshrl.u32 %v525, 7
        %v527 = vsub.s32 1, %v526
        %v528 = vrot.slane %v406, %v527
        %v531 = vmul.f32 %v502, %v524
        %v532 = vmul.f32 %v504, %v528
        %v533 = vmul.f32 %v506, %v524
        %v534 = vmul.f32 %v508, %v528
        %v536 = vlaneseq
        %v537 = vshrl.u32 %v536, 7
        %v538 = vsub.s32 0, %v537
        %v539 = vrot.slane %v429, %v538
        %v540 = vlaneseq
        %v541 = vshrl.u32 %v540, 7
        %v542 = vsub.s32 2, %v541
        %v543 = vrot.slane %v429, %v542
        %v546 = vlaneseq
        %v547 = vshrl.u32 %v546, 7
        %v548 = vsub.s32 0, %v547
        %v549 = vrot.slane %v539, %v548
        %v550 = vlaneseq
        %v551 = vshrl.u32 %v550, 7
        %v552 = vsub.s32 0, %v551
        %v553 = vrot.slane %v543, %v552
        %v554 = vmul.f32 %v512, %v549
        %v555 = vmul.f32 %v514, %v553
        %v556 = vmul.f32 %v516, %v549
        %v557 = vmul.f32 %v518, %v553
        %v558 = vpack.c.bf16 %v556, %v554
        %v559 = vpack.c.bf16 %v557, %v555
        %v562 = vunpack.c.l.b16 %v404
        %v563 = vunpack.c.h.b16 %v404
        %v564 = vunpack.c.l.b16 %v405
        %v565 = vunpack.c.h.b16 %v405
        %v566 = vpack.c.b16 %v564, %v562
        %v567 = vpack.c.b16 %v565, %v563
        %570 = vmatprep.subr.bf16.mxu0 0
        %571 = vmatpush1.bf16.xpose.msra.mxu0 0
        %572 = vmatprep.subr.bf16.mxu0 0
        %573 = vmatpush1.bf16.xpose.msra.mxu0 0
        %574 = vmatprep.subr.bf16.mxu0 0
        %575 = vmatpush1.bf16.xpose.msra.mxu0 0
        %576 = vmatprep.subr.bf16.mxu0 0
        %577 = vmatpush1.bf16.xpose.msra.mxu0 0
        %578 = vmatprep.subr.bf16.mxu0 0
        %579 = vmatpush1.bf16.xpose.msra.mxu0 0
        %580 = vmatprep.subr.bf16.mxu0 0
        %581 = vmatpush1.bf16.xpose.msra.mxu0 0
        %582 = vmatprep.subr.bf16.mxu0 0
        %583 = vmatpush1.bf16.xpose.msra.mxu0 0
        %584 = vmatprep.subr.bf16.mxu0 %v559
        %585 = vmatpush1.bf16.xpose.msra.mxu0 %v558
        %586 = vmatprep.subr.bf16.mxu0 0
        %587 = vmatpush2.bf16.xpose.msra.mxu0 0
        %588 = vmatprep.subr.bf16.mxu0 0
        %589 = vmatpush2.bf16.xpose.msra.mxu0 0
        %590 = vmatprep.subr.bf16.mxu0 0
        %591 = vmatpush2.bf16.xpose.msra.mxu0 0
        %592 = vmatprep.subr.bf16.mxu0 0
        %593 = vmatpush2.bf16.xpose.msra.mxu0 0
        %594 = vmatprep.subr.bf16.mxu0 0
        %595 = vmatpush2.bf16.xpose.msra.mxu0 0
        %596 = vmatprep.subr.bf16.mxu0 0
        %597 = vmatpush2.bf16.xpose.msra.mxu0 0
        %598 = vmatprep.subr.bf16.mxu0 0
        %599 = vmatpush2.bf16.xpose.msra.mxu0 0
        %600 = vmatprep.subr.bf16.mxu0 0
        %601 = vmatpush2.bf16.xpose.msra.mxu0 0
        %602 = vmatprep.mubr.bf16.mxu0 %v567
        %603 = vmatmul.mubr.bf16.gmra.mxu0 %v566
        %v604 = vpop.f32.mrf.mxu0
        %v605 = vadd.f32 0.0, %v604
        %v606 = vpop.f32.mrf.mxu0
        %v607 = vpop.f32.mrf.mxu0
        %v608 = vadd.f32 0.0, %v607
        %v609 = vpop.f32.mrf.mxu0
        %610 = vdwg.mxu0
        %v611 = vpack.c.bf16 %v516, %v512
        %v612 = vpack.c.bf16 %v518, %v514
        %v613 = vpack.c.bf16 %v608, %v605
        %vm614 = vcmask 130048
        %v616 = vsel %vm614, %v613, 0
        %618 = vmatprep.subr.bf16.mxu0 0
        %619 = vmatpush1.bf16.msra.mxu0 0
        %620 = vmatprep.subr.bf16.mxu0 0
        %621 = vmatpush1.bf16.msra.mxu0 0
        %622 = vmatprep.subr.bf16.mxu0 0
        %623 = vmatpush1.bf16.msra.mxu0 0
        %624 = vmatprep.subr.bf16.mxu0 0
        %625 = vmatpush1.bf16.msra.mxu0 0
        %626 = vmatprep.subr.bf16.mxu0 0
        %627 = vmatpush1.bf16.msra.mxu0 0
        %628 = vmatprep.subr.bf16.mxu0 0
        %629 = vmatpush1.bf16.msra.mxu0 0
        %630 = vmatprep.subr.bf16.mxu0 0
        %631 = vmatpush1.bf16.msra.mxu0 0
        %632 = vmatprep.subr.bf16.mxu0 %v612
        %633 = vmatpush1.bf16.msra.mxu0 %v611
        %634 = vmatprep.subr.bf16.mxu0 0
        %635 = vmatpush2.bf16.msra.mxu0 0
        %636 = vmatprep.subr.bf16.mxu0 0
        %637 = vmatpush2.bf16.msra.mxu0 0
        %638 = vmatprep.subr.bf16.mxu0 0
        %639 = vmatpush2.bf16.msra.mxu0 0
        %640 = vmatprep.subr.bf16.mxu0 0
        %641 = vmatpush2.bf16.msra.mxu0 0
        %642 = vmatprep.subr.bf16.mxu0 0
        %643 = vmatpush2.bf16.msra.mxu0 0
        %644 = vmatprep.subr.bf16.mxu0 0
        %645 = vmatpush2.bf16.msra.mxu0 0
        %646 = vmatprep.subr.bf16.mxu0 0
        %647 = vmatpush2.bf16.msra.mxu0 0
        %648 = vmatprep.subr.bf16.mxu0 0
        %649 = vmatpush2.bf16.msra.mxu0 0
        %650 = vmatprep.mubr.bf16.mxu0 0
        %651 = vmatmul.mubr.bf16.gmra.mxu0 %v616
        %v652 = vpop.f32.mrf.mxu0
        %v653 = vadd.f32 0.0, %v652
        %v654 = vpop.f32.mrf.mxu0
        %v655 = vadd.f32 0.0, %v654
        %v656 = vpop.f32.mrf.mxu0
        %v657 = vadd.f32 0.0, %v656
        %v658 = vpop.f32.mrf.mxu0
        %v659 = vadd.f32 0.0, %v658
        %660 = vdwg.mxu0
        %v661 = vmax.f32 %v653, %v657
        %v662 = vrot.slane %v661, 4
        %v663 = vmax.f32 %v661, %v662
        %v664 = vrot.slane %v663, 2
        %v665 = vmax.f32 %v663, %v664
        %v666 = vrot.slane %v665, 1
        %v667 = vmax.f32 %v665, %v666
        %v668 = vmax.f32 %v655, %v659
        %v669 = vrot.slane %v668, 4
        %v670 = vmax.f32 %v668, %v669
        %v671 = vrot.slane %v670, 2
        %v672 = vmax.f32 %v670, %v671
        %v673 = vrot.slane %v672, 1
        %v674 = vmax.f32 %v672, %v673
        %v675 = vsub.f32 %v653, %v667
        %v676 = vsub.f32 %v655, %v674
        %v677 = vsub.f32 %v657, %v667
        %v678 = vsub.f32 %v659, %v674
        %v679 = vpack.c.bf16 %v677, %v675
        %v680 = vpack.c.bf16 %v678, %v676
        %v682 = vmul.bf16 %v679, 1069105081
        %v683 = vpow.bf16.pop %v682
        %v685 = vmul.bf16 %v680, 1069105081
        %v686 = vpow.bf16.pop %v685
        %v687 = vunpack.c.l.bf16 %v683
        %v688 = vunpack.c.l.bf16 %v686
        %v689 = vunpack.c.h.bf16 %v683
        %v690 = vunpack.c.h.bf16 %v686
        %v691 = vadd.f32 %v687, %v689
        %v692 = vrot.slane %v691, 4
        %v693 = vadd.f32 %v691, %v692
        %v694 = vrot.slane %v693, 2
        %v695 = vadd.f32 %v693, %v694
        %v696 = vrot.slane %v695, 1
        %v697 = vadd.f32 %v695, %v696
        %v698 = vadd.f32 %v688, %v690
        %v699 = vrot.slane %v698, 4
        %v700 = vadd.f32 %v698, %v699
        %v701 = vrot.slane %v700, 2
        %v702 = vadd.f32 %v700, %v701
        %v703 = vrot.slane %v702, 1
        %v704 = vadd.f32 %v702, %v703
        %v705 = vrcp.pop %v697
        %v706 = vrcp.pop %v704
        %v707 = vmul.f32 %v687, %v705
        %v708 = vmul.f32 %v688, %v706
        %v709 = vmul.f32 %v689, %v705
        %v710 = vmul.f32 %v690, %v706
        %v711 = vpack.c.bf16 %v709, %v707
        %v712 = vpack.c.bf16 %v710, %v708
        %v713 = vpack.c.bf16 %v533, %v531
        %v714 = vpack.c.bf16 %v534, %v532
        %715 = vmatprep.subr.bf16.mxu0 0
        %716 = vmatpush1.bf16.xpose.msra.mxu0 0
        %717 = vmatprep.subr.bf16.mxu0 0
        %718 = vmatpush1.bf16.xpose.msra.mxu0 0
        %719 = vmatprep.subr.bf16.mxu0 0
        %720 = vmatpush1.bf16.xpose.msra.mxu0 0
        %721 = vmatprep.subr.bf16.mxu0 0
        %722 = vmatpush1.bf16.xpose.msra.mxu0 0
        %723 = vmatprep.subr.bf16.mxu0 0
        %724 = vmatpush1.bf16.xpose.msra.mxu0 0
        %725 = vmatprep.subr.bf16.mxu0 0
        %726 = vmatpush1.bf16.xpose.msra.mxu0 0
        %727 = vmatprep.subr.bf16.mxu0 0
        %728 = vmatpush1.bf16.xpose.msra.mxu0 0
        %729 = vmatprep.subr.bf16.mxu0 %v712
        %730 = vmatpush1.bf16.xpose.msra.mxu0 %v711
        %731 = vmatprep.subr.bf16.mxu0 0
        %732 = vmatpush2.bf16.xpose.msra.mxu0 0
        %733 = vmatprep.subr.bf16.mxu0 0
        %734 = vmatpush2.bf16.xpose.msra.mxu0 0
        %735 = vmatprep.subr.bf16.mxu0 0
        %736 = vmatpush2.bf16.xpose.msra.mxu0 0
        %737 = vmatprep.subr.bf16.mxu0 0
        %738 = vmatpush2.bf16.xpose.msra.mxu0 0
        %739 = vmatprep.subr.bf16.mxu0 0
        %740 = vmatpush2.bf16.xpose.msra.mxu0 0
        %741 = vmatprep.subr.bf16.mxu0 0
        %742 = vmatpush2.bf16.xpose.msra.mxu0 0
        %743 = vmatprep.subr.bf16.mxu0 0
        %744 = vmatpush2.bf16.xpose.msra.mxu0 0
        %745 = vmatprep.subr.bf16.mxu0 0
        %746 = vmatpush2.bf16.xpose.msra.mxu0 0
        %747 = vmatprep.mubr.bf16.mxu0 %v714
        %748 = vmatmul.mubr.bf16.gmra.mxu0 %v713
        %v749 = vpop.f32.mrf.mxu0
        %v750 = vadd.f32 0.0, %v749
        %v751 = vpop.f32.mrf.mxu0
        %v752 = vpop.f32.mrf.mxu0
        %v753 = vadd.f32 0.0, %v752
        %v754 = vpop.f32.mrf.mxu0
        %755 = vdwg.mxu0
        %v757 = vlaneseq
        %v758 = vshrl.u32 %v757, 7
        %v759 = vsub.s32 0, %v758
        %v760 = vrot.slane %v409, %v759
        %v763 = vsel %vm614, %v750, 0
        %v766 = vsel %vm614, %v753, 0
        %768 = vmatprep.subr.mxu0 0.0
        %769 = vmatpush1.msra.mxu0 0.0
        %770 = vmatprep.subr.mxu0 0.0
        %771 = vmatpush1.msra.mxu0 0.0
        %772 = vmatprep.subr.mxu0 0.0
        %773 = vmatpush1.msra.mxu0 0.0
        %774 = vmatprep.subr.mxu0 0.0
        %775 = vmatpush1.msra.mxu0 0.0
        %776 = vmatprep.subr.mxu0 0.0
        %777 = vmatpush1.msra.mxu0 0.0
        %778 = vmatprep.subr.mxu0 0.0
        %779 = vmatpush1.msra.mxu0 0.0
        %780 = vmatprep.subr.mxu0 0.0
        %781 = vmatpush1.msra.mxu0 0.0
        %782 = vmatprep.subr.mxu0 0.0
        %783 = vmatpush1.msra.mxu0 0.0
        %784 = vmatprep.subr.mxu0 0.0
        %785 = vmatpush1.msra.mxu0 0.0
        %786 = vmatprep.subr.mxu0 0.0
        %787 = vmatpush1.msra.mxu0 0.0
        %788 = vmatprep.subr.mxu0 0.0
        %789 = vmatpush1.msra.mxu0 0.0
        %790 = vmatprep.subr.mxu0 0.0
        %791 = vmatpush1.msra.mxu0 0.0
        %792 = vmatprep.subr.mxu0 0.0
        %793 = vmatpush1.msra.mxu0 0.0
        %794 = vmatprep.subr.mxu0 0.0
        %795 = vmatpush1.msra.mxu0 0.0
        %796 = vmatprep.subr.mxu0 0.0
        %797 = vmatpush1.msra.mxu0 %v408
        %798 = vmatprep.subr.mxu0 0.0
        %799 = vmatpush1.msra.mxu0 %v407
        %800 = vmatprep.subr.mxu0 0.0
        %801 = vmatpush2.msra.mxu0 0.0
        %802 = vmatprep.subr.mxu0 0.0
        %803 = vmatpush2.msra.mxu0 0.0
        %804 = vmatprep.subr.mxu0 0.0
        %805 = vmatpush2.msra.mxu0 0.0
        %806 = vmatprep.subr.mxu0 0.0
        %807 = vmatpush2.msra.mxu0 0.0
        %808 = vmatprep.subr.mxu0 0.0
        %809 = vmatpush2.msra.mxu0 0.0
        %810 = vmatprep.subr.mxu0 0.0
        %811 = vmatpush2.msra.mxu0 0.0
        %812 = vmatprep.subr.mxu0 0.0
        %813 = vmatpush2.msra.mxu0 0.0
        %814 = vmatprep.subr.mxu0 0.0
        %815 = vmatpush2.msra.mxu0 0.0
        %816 = vmatprep.subr.mxu0 0.0
        %817 = vmatpush2.msra.mxu0 0.0
        %818 = vmatprep.subr.mxu0 0.0
        %819 = vmatpush2.msra.mxu0 0.0
        %820 = vmatprep.subr.mxu0 0.0
        %821 = vmatpush2.msra.mxu0 0.0
        %822 = vmatprep.subr.mxu0 0.0
        %823 = vmatpush2.msra.mxu0 0.0
        %824 = vmatprep.subr.mxu0 0.0
        %825 = vmatpush2.msra.mxu0 0.0
        %826 = vmatprep.subr.mxu0 0.0
        %827 = vmatpush2.msra.mxu0 0.0
        %828 = vmatprep.subr.mxu0 0.0
        %829 = vmatpush2.msra.mxu0 0.0
        %830 = vmatprep.subr.mxu0 0.0
        %831 = vmatpush2.msra.mxu0 0.0
        %832 = vmatprep.mubr.f32.mxu0 0.0
        %833 = vmatmul.mubr.f32.gmra.mxu0 %v763
        %v834 = vpop.f32.mrf.mxu0
        %v835 = vadd.f32 %v760, %v834
        %v836 = vpop.f32.mrf.mxu0
        %837 = vmatprep.mubr.f32.mxu0 0.0
        %838 = vmatmul.mubr.f32.gmra.mxu0 %v766
        %v839 = vpop.f32.mrf.mxu0
        %v840 = vadd.f32 %v760, %v839
        %v841 = vpop.f32.mrf.mxu0
        %842 = vdwg.mxu0
        %v843 = vsub.f32 %v835, %v750
        %v844 = vsub.f32 %v840, %v753
        %v846 = vsel %vm614, %v410, 0
        %v849 = vsel %vm614, %v411, 0
        %851 = vmatprep.subr.mxu0 0.0
        %852 = vmatpush1.msra.mxu0 0.0
        %853 = vmatprep.subr.mxu0 0.0
        %854 = vmatpush1.msra.mxu0 0.0
        %855 = vmatprep.subr.mxu0 0.0
        %856 = vmatpush1.msra.mxu0 0.0
        %857 = vmatprep.subr.mxu0 0.0
        %858 = vmatpush1.msra.mxu0 0.0
        %859 = vmatprep.subr.mxu0 0.0
        %860 = vmatpush1.msra.mxu0 0.0
        %861 = vmatprep.subr.mxu0 0.0
        %862 = vmatpush1.msra.mxu0 0.0
        %863 = vmatprep.subr.mxu0 0.0
        %864 = vmatpush1.msra.mxu0 0.0
        %865 = vmatprep.subr.mxu0 0.0
        %866 = vmatpush1.msra.mxu0 0.0
        %867 = vmatprep.subr.mxu0 0.0
        %868 = vmatpush1.msra.mxu0 0.0
        %869 = vmatprep.subr.mxu0 0.0
        %870 = vmatpush1.msra.mxu0 0.0
        %871 = vmatprep.subr.mxu0 0.0
        %872 = vmatpush1.msra.mxu0 0.0
        %873 = vmatprep.subr.mxu0 0.0
        %874 = vmatpush1.msra.mxu0 0.0
        %875 = vmatprep.subr.mxu0 0.0
        %876 = vmatpush1.msra.mxu0 0.0
        %877 = vmatprep.subr.mxu0 0.0
        %878 = vmatpush1.msra.mxu0 0.0
        %879 = vmatprep.subr.mxu0 0.0
        %880 = vmatpush1.msra.mxu0 %v844
        %881 = vmatprep.subr.mxu0 0.0
        %882 = vmatpush1.msra.mxu0 %v843
        %883 = vmatprep.subr.mxu0 0.0
        %884 = vmatpush2.msra.mxu0 0.0
        %885 = vmatprep.subr.mxu0 0.0
        %886 = vmatpush2.msra.mxu0 0.0
        %887 = vmatprep.subr.mxu0 0.0
        %888 = vmatpush2.msra.mxu0 0.0
        %889 = vmatprep.subr.mxu0 0.0
        %890 = vmatpush2.msra.mxu0 0.0
        %891 = vmatprep.subr.mxu0 0.0
        %892 = vmatpush2.msra.mxu0 0.0
        %893 = vmatprep.subr.mxu0 0.0
        %894 = vmatpush2.msra.mxu0 0.0
        %895 = vmatprep.subr.mxu0 0.0
        %896 = vmatpush2.msra.mxu0 0.0
        %897 = vmatprep.subr.mxu0 0.0
        %898 = vmatpush2.msra.mxu0 0.0
        %899 = vmatprep.subr.mxu0 0.0
        %900 = vmatpush2.msra.mxu0 0.0
        %901 = vmatprep.subr.mxu0 0.0
        %902 = vmatpush2.msra.mxu0 0.0
        %903 = vmatprep.subr.mxu0 0.0
        %904 = vmatpush2.msra.mxu0 0.0
        %905 = vmatprep.subr.mxu0 0.0
        %906 = vmatpush2.msra.mxu0 0.0
        %907 = vmatprep.subr.mxu0 0.0
        %908 = vmatpush2.msra.mxu0 0.0
        %909 = vmatprep.subr.mxu0 0.0
        %910 = vmatpush2.msra.mxu0 0.0
        %911 = vmatprep.subr.mxu0 0.0
        %912 = vmatpush2.msra.mxu0 0.0
        %913 = vmatprep.subr.mxu0 0.0
        %914 = vmatpush2.msra.mxu0 0.0
        %915 = vmatprep.mubr.f32.mxu0 0.0
        %916 = vmatmul.mubr.f32.gmra.mxu0 %v846
        %v917 = vpop.f32.mrf.mxu0
        %v918 = vadd.f32 0.0, %v917
        %v919 = vpop.f32.mrf.mxu0
        %920 = vmatprep.mubr.f32.mxu0 0.0
        %921 = vmatmul.mubr.f32.gmra.mxu0 %v849
        %v922 = vpop.f32.mrf.mxu0
        %v923 = vadd.f32 0.0, %v922
        %v924 = vpop.f32.mrf.mxu0
        %925 = vdwg.mxu0
        %v926 = vmax.f32 %v918, 0.0
        %v927 = vmax.f32 %v923, 0.0
        %v929 = vsel %vm614, %v412, 0
        %v932 = vsel %vm614, %v413, 0
        %v935 = vsel %vm614, %v414, 0
        %v938 = vsel %vm614, %v415, 0
        %940 = vmatprep.subr.mxu0 0.0
        %941 = vmatpush1.msra.mxu0 0.0
        %942 = vmatprep.subr.mxu0 0.0
        %943 = vmatpush1.msra.mxu0 0.0
        %944 = vmatprep.subr.mxu0 0.0
        %945 = vmatpush1.msra.mxu0 0.0
        %946 = vmatprep.subr.mxu0 0.0
        %947 = vmatpush1.msra.mxu0 0.0
        %948 = vmatprep.subr.mxu0 0.0
        %949 = vmatpush1.msra.mxu0 0.0
        %950 = vmatprep.subr.mxu0 0.0
        %951 = vmatpush1.msra.mxu0 0.0
        %952 = vmatprep.subr.mxu0 0.0
        %953 = vmatpush1.msra.mxu0 0.0
        %954 = vmatprep.subr.mxu0 0.0
        %955 = vmatpush1.msra.mxu0 0.0
        %956 = vmatprep.subr.mxu0 0.0
        %957 = vmatpush1.msra.mxu0 0.0
        %958 = vmatprep.subr.mxu0 0.0
        %959 = vmatpush1.msra.mxu0 0.0
        %960 = vmatprep.subr.mxu0 0.0
        %961 = vmatpush1.msra.mxu0 0.0
        %962 = vmatprep.subr.mxu0 0.0
        %963 = vmatpush1.msra.mxu0 0.0
        %964 = vmatprep.subr.mxu0 0.0
        %965 = vmatpush1.msra.mxu0 0.0
        %966 = vmatprep.subr.mxu0 0.0
        %967 = vmatpush1.msra.mxu0 0.0
        %968 = vmatprep.subr.mxu0 0.0
        %969 = vmatpush1.msra.mxu0 %v927
        %970 = vmatprep.subr.mxu0 0.0
        %971 = vmatpush1.msra.mxu0 %v926
        %972 = vmatprep.subr.mxu0 0.0
        %973 = vmatpush2.msra.mxu0 0.0
        %974 = vmatprep.subr.mxu0 0.0
        %975 = vmatpush2.msra.mxu0 0.0
        %976 = vmatprep.subr.mxu0 0.0
        %977 = vmatpush2.msra.mxu0 0.0
        %978 = vmatprep.subr.mxu0 0.0
        %979 = vmatpush2.msra.mxu0 0.0
        %980 = vmatprep.subr.mxu0 0.0
        %981 = vmatpush2.msra.mxu0 0.0
        %982 = vmatprep.subr.mxu0 0.0
        %983 = vmatpush2.msra.mxu0 0.0
        %984 = vmatprep.subr.mxu0 0.0
        %985 = vmatpush2.msra.mxu0 0.0
        %986 = vmatprep.subr.mxu0 0.0
        %987 = vmatpush2.msra.mxu0 0.0
        %988 = vmatprep.subr.mxu0 0.0
        %989 = vmatpush2.msra.mxu0 0.0
        %990 = vmatprep.subr.mxu0 0.0
        %991 = vmatpush2.msra.mxu0 0.0
        %992 = vmatprep.subr.mxu0 0.0
        %993 = vmatpush2.msra.mxu0 0.0
        %994 = vmatprep.subr.mxu0 0.0
        %995 = vmatpush2.msra.mxu0 0.0
        %996 = vmatprep.subr.mxu0 0.0
        %997 = vmatpush2.msra.mxu0 0.0
        %998 = vmatprep.subr.mxu0 0.0
        %999 = vmatpush2.msra.mxu0 0.0
        %1000 = vmatprep.subr.mxu0 0.0
        %1001 = vmatpush2.msra.mxu0 0.0
        %1002 = vmatprep.subr.mxu0 0.0
        %1003 = vmatpush2.msra.mxu0 0.0
        %1004 = vmatprep.mubr.f32.mxu0 0.0
        %1005 = vmatmul.mubr.f32.gmra.mxu0 %v929
        %v1006 = vpop.f32.mrf.mxu0
        %v1007 = vadd.f32 0.0, %v1006
        %v1008 = vpop.f32.mrf.mxu0
        %1009 = vmatprep.mubr.f32.mxu0 0.0
        %1010 = vmatmul.mubr.f32.gmra.mxu0 %v932
        %v1011 = vpop.f32.mrf.mxu0
        %v1012 = vadd.f32 0.0, %v1011
        %v1013 = vpop.f32.mrf.mxu0
        %1014 = vmatprep.mubr.f32.mxu0 0.0
        %1015 = vmatmul.mubr.f32.gmra.mxu0 %v935
        %v1016 = vpop.f32.mrf.mxu0
        %v1017 = vadd.f32 0.0, %v1016
        %v1018 = vpop.f32.mrf.mxu0
        %1019 = vmatprep.mubr.f32.mxu0 0.0
        %1020 = vmatmul.mubr.f32.gmra.mxu0 %v938
        %v1021 = vpop.f32.mrf.mxu0
        %v1022 = vadd.f32 0.0, %v1021
        %v1023 = vpop.f32.mrf.mxu0
        %1024 = vdwg.mxu0
        %v1025 = vpack.c.bf16 %v1012, %v1007
        %v1026 = vpack.c.bf16 %v1022, %v1017
        %v1028 = vsel %vm614, %v1025, 0
        %v1031 = vsel %vm614, %v1026, 0
        %1033 = vmatprep.subr.bf16.mxu0 0
        %1034 = vmatpush1.bf16.msra.mxu0 0
        %1035 = vmatprep.subr.bf16.mxu0 0
        %1036 = vmatpush1.bf16.msra.mxu0 0
        %1037 = vmatprep.subr.bf16.mxu0 0
        %1038 = vmatpush1.bf16.msra.mxu0 0
        %1039 = vmatprep.subr.bf16.mxu0 0
        %1040 = vmatpush1.bf16.msra.mxu0 0
        %1041 = vmatprep.subr.bf16.mxu0 0
        %1042 = vmatpush1.bf16.msra.mxu0 0
        %1043 = vmatprep.subr.bf16.mxu0 0
        %1044 = vmatpush1.bf16.msra.mxu0 0
        %1045 = vmatprep.subr.bf16.mxu0 0
        %1046 = vmatpush1.bf16.msra.mxu0 0
        %1047 = vmatprep.subr.bf16.mxu0 %v712
        %1048 = vmatpush1.bf16.msra.mxu0 %v711
        %1049 = vmatprep.subr.bf16.mxu0 0
        %1050 = vmatpush2.bf16.msra.mxu0 0
        %1051 = vmatprep.subr.bf16.mxu0 0
        %1052 = vmatpush2.bf16.msra.mxu0 0
        %1053 = vmatprep.subr.bf16.mxu0 0
        %1054 = vmatpush2.bf16.msra.mxu0 0
        %1055 = vmatprep.subr.bf16.mxu0 0
        %1056 = vmatpush2.bf16.msra.mxu0 0
        %1057 = vmatprep.subr.bf16.mxu0 0
        %1058 = vmatpush2.bf16.msra.mxu0 0
        %1059 = vmatprep.subr.bf16.mxu0 0
        %1060 = vmatpush2.bf16.msra.mxu0 0
        %1061 = vmatprep.subr.bf16.mxu0 0
        %1062 = vmatpush2.bf16.msra.mxu0 0
        %1063 = vmatprep.subr.bf16.mxu0 0
        %1064 = vmatpush2.bf16.msra.mxu0 0
        %1065 = vmatprep.mubr.bf16.mxu0 0
        %1066 = vmatmul.mubr.bf16.gmra.mxu0 %v1028
        %v1067 = vpop.f32.mrf.mxu0
        %v1068 = vadd.f32 %v416, %v1067
        %v1069 = vpop.f32.mrf.mxu0
        %v1070 = vadd.f32 %v417, %v1069
        %v1071 = vpop.f32.mrf.mxu0
        %v1072 = vadd.f32 %v418, %v1071
        %v1073 = vpop.f32.mrf.mxu0
        %v1074 = vadd.f32 %v419, %v1073
        %1075 = vmatprep.mubr.bf16.mxu0 0
        %1076 = vmatmul.mubr.bf16.gmra.mxu0 %v1031
        %v1077 = vpop.f32.mrf.mxu0
        %v1078 = vadd.f32 %v420, %v1077
        %v1079 = vpop.f32.mrf.mxu0
        %v1080 = vadd.f32 %v421, %v1079
        %v1081 = vpop.f32.mrf.mxu0
        %v1082 = vadd.f32 %v422, %v1081
        %v1083 = vpop.f32.mrf.mxu0
        %v1084 = vadd.f32 %v423, %v1083
        %1085 = vdwg.mxu0
        %1086 = vst [vmem:[%s390] sm:$0xff] %v1068
        %1087 = vst [vmem:[%s390 + $0x8] sm:$0xff] %v1070
        %1088 = vst [vmem:[%s390 + $0x10] sm:$0xff] %v1072
        %1089 = vst [vmem:[%s390 + $0x18] sm:$0xff] %v1074
        %1090 = vst [vmem:[%s390 + $0x20] sm:$0xff] %v1078
        %1091 = vst [vmem:[%s390 + $0x28] sm:$0xff] %v1080
        %1092 = vst [vmem:[%s390 + $0x30] sm:$0xff] %v1082
        %1093 = vst [vmem:[%s390 + $0x38] sm:$0xff] %v1084
        %s1094 = sand.u32 %s255, 1
        %s1095 = scalar_lea.sflag [#allocation4], %s1094
        %s1096 = sand.u32 %s255, 1
        %s1097 = smul.addr %s1096, 64
        %s1098 = scalar_lea.vmem [#allocation5], %s1097
        // Predicated region
        $region65: #{tpu_custom_call.1} parent=59 // pred_check
          %p1099 = pneg %p265
        $region66: #{tpu_custom_call.1} parent=59 // pred_check_branch
          %1101 = sbr.rel (%p1099) target = $region68
        $region67: #{tpu_custom_call.1} parent=59 // pred_region
          %s1103 = ssub.s32 1024, 1024
          %1104 = vsyncadd %s1095, %s1103
          %s1105 = smul.addr %s27, 8
          %s1106 = smul.addr %s1105, 128
          %s1107 = scalar_lea.hbm %s10, %s1106
          %s1108 = sshll.u32 %s1098, 4
          %s1109 = int_to_ptr.vmem [resolvable:$true] %s1108
          %1114 = dma.vmem_to_hbm [thread:$0]  %s1109, 1024, %s1107, %s1095, 256, 256, 16
        $region68: #{tpu_custom_call.1} parent=59 // pred_fallthru
          _
      $region60: #{tpu_custom_call.1} parent=5 // pred_fallthru
        _
      %p1115 = scmp.le.s32.totalorder 2, %s22
      // Predicated region
      $region69: #{tpu_custom_call.1} parent=5 // pred_check
        %p1116 = pneg %p1115
      $region70: #{tpu_custom_call.1} parent=5 // pred_check_branch
        %1118 = sbr.rel (%p1116) target = $region72
      $region71: #{tpu_custom_call.1} parent=5 // pred_region
        %s1119 = ssub.s32 %s22, 2
        // Predicated region
        $region73: #{tpu_custom_call.1} parent=71 // pred_check
          %p1120 = pneg %p271
        $region74: #{tpu_custom_call.1} parent=71 // pred_check_branch
          %1122 = sbr.rel (%p1120) target = $region76
        $region75: #{tpu_custom_call.1} parent=71 // pred_region
          %s1123 = sand.u32 %s256, 1
          %s1124 = scalar_lea.sflag [#allocation4], %s1123
          %s1125 = sand.u32 %s256, 1
          %s1126 = smul.addr %s1125, 64
          %s1127 = scalar_lea.vmem [#allocation5], %s1126
          %1128 = dma.done %s1124, 1024
        $region76: #{tpu_custom_call.1} parent=71 // pred_fallthru
          _
      $region72: #{tpu_custom_call.1} parent=5 // pred_fallthru
        _
    $region6: #{tpu_custom_call.1} parent=1 // loop_footer
      %s26 = sadd.s32 1, %s22
    $region7: #{tpu_custom_call.1} parent=1 // loop_footer_branch
      %21 = sbr.rel target = $region3
    $region8: #{tpu_custom_call.1} parent=1 // loop_exit
      _
    %1129 = vsyncpa [#allocation3], 1
    %s1130 = scalar_lea.sflag [#allocation3], 1
    %1131 = vsyncpa %s1130, 1
    %1132 = vsyncpa [#allocation4], 1
    %s1133 = scalar_lea.sflag [#allocation4], 1
    %1134 = vsyncpa %s1133, 1

</llo_original>
